<compile_context>
chip_gen: v5e
topology: v5e:2x2
jax: 0.10.0
libtpu: 0.0.40
codegen_flags: <defaults>
</compile_context>

<pallas_src>
import functools

import jax
import jax.numpy as jnp
from jax.experimental import pallas as pl
from jax.experimental.pallas import tpu as pltpu


def _maxpool_kernel(x_ref, o_ref, pad_ref, row_ref=None, *, K, S, out_h, out_w,
                    H, W, r_lo, q_lo, zero_pad, neg_fill):
    """One lane block: x_ref (H, W, L) -> o_ref (out_h, out_w, L).

    pad_ref (H_v, W_v, L) holds the window footprint of x in "virtual padded" coords:
    scratch row a <-> x row r_lo + a, scratch col b <-> x col q_lo + b. Out-of-range
    positions are the MaxPool -inf border; x row/col == -1 is the ZeroPad2d zero border.
    """
    L = x_ref.shape[-1]
    H_v, W_v, _ = pad_ref.shape

    # ---- build the padded plane in VMEM (replaces wrapper-side jnp.pad) ----
    pad_ref[...] = jnp.full((H_v, W_v, L), neg_fill, pad_ref.dtype)

    if zero_pad:
        zr = -1 - r_lo          # scratch row of the ZeroPad2d zero row (x row == -1)
        zc = -1 - q_lo          # scratch col of the ZeroPad2d zero col (x col == -1)
        b0, b1 = max(0, -1 - q_lo), min(W_v, W - q_lo)
        a0, a1 = max(0, -1 - r_lo), min(H_v, H - r_lo)
        if 0 <= zr < H_v and b1 > b0:
            pad_ref[zr:zr + 1, b0:b1, :] = jnp.zeros((1, b1 - b0, L), pad_ref.dtype)
        if 0 <= zc < W_v and a1 > a0:
            pad_ref[a0:a1, zc:zc + 1, :] = jnp.zeros((a1 - a0, 1, L), pad_ref.dtype)

    ra, rb = max(0, r_lo), min(H, r_lo + H_v)      # x rows present in the window
    qa, qb = max(0, q_lo), min(W, q_lo + W_v)      # x cols present in the window
    if rb > ra and qb > qa:
        pad_ref[ra - r_lo:rb - r_lo, qa - q_lo:qb - q_lo, :] = x_ref[ra:rb, qa:qb, :]

    # ---- separable max (rows then cols), stride folded in ----
    if S == 1:
        rm = pad_ref[0:out_h, :, :]
        for kh in range(1, K):
            rm = jnp.maximum(rm, pad_ref[kh:kh + out_h, :, :])
        out = rm[:, 0:out_w, :]
        for kw in range(1, K):
            out = jnp.maximum(out, rm[:, kw:kw + out_w, :])
        o_ref[...] = out
    else:
        # Strided subsample done with statically-unrolled slices (safe on all generations).
        # TODO(synk): for large out_h/out_w swap to strided ref reads
        #             (ref[pl.ds(start, size, stride=S)]) to shrink unrolled code.
        for i in range(out_h):
            r = i * S
            acc = pad_ref[r:r + 1, :, :]
            for kh in range(1, K):
                acc = jnp.maximum(acc, pad_ref[r + kh:r + kh + 1, :, :])
            row_ref[i:i + 1, :, :] = acc
        for j in range(out_w):
            c = j * S
            col = row_ref[:, c:c + 1, :]
            for kw in range(1, K):
                col = jnp.maximum(col, row_ref[:, c + kw:c + kw + 1, :])
            o_ref[:, j:j + 1, :] = col


def maxpool_forward(x, *, kernel_size, stride=1, padding=1, zero_pad=False):
    """Reproduces MaxPool.forward of the PyTorch module (NCHW in, NCHW out)."""
    N, C, H, W = x.shape
    K, S, P = kernel_size, stride, padding
    NC = N * C
    dtype = x.dtype

    if zero_pad:
        # ZeroPad2d((1,0,1,0)) -> MaxPool2d(K, S, P) -> crop [1:, 1:]
        out_h = (H + 1 + 2 * P - K) // S + 1 - 1
        out_w = (W + 1 + 2 * P - K) // S + 1 - 1
        off = S - P - 1           # window start of final output (i, j): x row/col i*S + off
    else:
        out_h = (H + 2 * P - K) // S + 1
        out_w = (W + 2 * P - K) // S + 1
        off = -P
    r_lo = q_lo = off
    H_v = (out_h - 1) * S + K      # rows of the "virtual padded" window footprint
    W_v = (out_w - 1) * S + K

    if jnp.issubdtype(dtype, jnp.floating):
        neg_fill = float("-inf")
    else:
        neg_fill = int(jnp.iinfo(dtype).min)   # integer inputs: use dtype min, not -inf

    LANE = 128
    NCp = ((NC + LANE - 1) // LANE) * LANE

    # lane-dense, channels-last layout (layout plumbing only)
    xl = jnp.transpose(x.reshape(NC, H, W), (1, 2, 0))
    if NCp != NC:
        xl = jnp.pad(xl, ((0, 0), (0, 0), (0, NCp - NC)))

    # lane-block size: largest of {512, 256, 128} dividing NCp that fits a conservative
    # VMEM budget (double-buffered in/out blocks + scratch), sized for v7x's 64 MiB VMEM.
    def _vmem_elems(L):
        return (2 * H * W + 2 * out_h * out_w + H_v * W_v
                + (out_h * W_v if S > 1 else 0)) * L

    L = LANE
    for cand in (512, 256, 128):
        if NCp % cand == 0 and _vmem_elems(cand) * dtype.itemsize <= 24 * 1024 * 1024:
            L = cand
            break
    vmem_limit = int(min(max(2 * _vmem_elems(L) * dtype.itemsize, 16 * 1024 * 1024),
                         64 * 1024 * 1024))

    scratch_shapes = [pltpu.VMEM((H_v, W_v, L), dtype)]
    if S > 1:
        scratch_shapes.append(pltpu.VMEM((out_h, W_v, L), dtype))

    kernel = functools.partial(
        _maxpool_kernel, K=K, S=S, out_h=out_h, out_w=out_w, H=H, W=W,
        r_lo=r_lo, q_lo=q_lo, zero_pad=zero_pad, neg_fill=neg_fill)

    cost = pl.CostEstimate(
        flops=2 * (K - 1) * out_h * out_w * NCp,
        transcendentals=0,
        bytes_accessed=(H * W + out_h * out_w) * NCp * dtype.itemsize)

    # TODO(synk): when NCp // L == 1 and H is large, add a second parallel grid axis over
    #             output-row tiles (with a K-1 halo) so both v7x TensorCores get work.
    y = pl.pallas_call(
        kernel,
        out_shape=jax.ShapeDtypeStruct((out_h, out_w, NCp), dtype),
        grid=(NCp // L,),
        in_specs=[pl.BlockSpec((H, W, L), lambda l: (0, 0, l))],
        out_specs=pl.BlockSpec((out_h, out_w, L), lambda l: (0, 0, l)),
        scratch_shapes=scratch_shapes,
        compiler_params=pltpu.CompilerParams(
            dimension_semantics=("parallel",),
            vmem_limit_bytes=vmem_limit),
        cost_estimate=cost,
    )(xl)

    # back to NCHW (layout plumbing)
    return jnp.transpose(y[:, :, :NC], (2, 0, 1)).reshape(N, C, out_h, out_w)


def _maxpool_reference(x, *, kernel_size, stride=1, padding=1, zero_pad=False):
    """Pure-JAX reference with identical semantics (shifted-window max)."""
    if zero_pad:
        x = jnp.pad(x, ((0, 0), (0, 0), (1, 0), (1, 0)), constant_values=0.0)
    N, C, H, W = x.shape
    xp = jnp.pad(
        x,
        ((0, 0), (0, 0), (padding, padding), (padding, padding)),
        constant_values=-jnp.inf,
    )
    out_h = (H + 2 * padding - kernel_size) // stride + 1
    out_w = (W + 2 * padding - kernel_size) // stride + 1
    acc = None
    for kh in range(kernel_size):
        for kw in range(kernel_size):
            win = xp[
                :, :,
                kh:kh + (out_h - 1) * stride + 1:stride,
                kw:kw + (out_w - 1) * stride + 1:stride,
            ]
            acc = win if acc is None else jnp.maximum(acc, win)
    if zero_pad:
        acc = acc[:, :, 1:, 1:]
    return acc


if __name__ == "__main__":
    key = jax.random.PRNGKey(0)
    x = jax.random.normal(key, (2, 4, 16, 16), dtype=jnp.float32)

    # Default module config: MaxPool(kernel_size=3) -> stride=1, padding=1, zero_pad=False
    out = maxpool_forward(x, kernel_size=3, stride=1, padding=1, zero_pad=False)
    out = jax.block_until_ready(out)
    ref = _maxpool_reference(x, kernel_size=3, stride=1, padding=1, zero_pad=False)
    assert out.shape == ref.shape == (2, 4, 16, 16), (out.shape, ref.shape)
    assert jnp.allclose(out, ref), "mismatch (stride=1, zero_pad=False)"

    # zero_pad=True, stride=2 variant (PNASNet-style reduction-cell usage)
    out2 = maxpool_forward(x, kernel_size=3, stride=2, padding=1, zero_pad=True)
    out2 = jax.block_until_ready(out2)
    ref2 = _maxpool_reference(x, kernel_size=3, stride=2, padding=1, zero_pad=True)
    assert out2.shape == ref2.shape, (out2.shape, ref2.shape)
    assert jnp.allclose(out2, ref2), "mismatch (stride=2, zero_pad=True)"

    print("KERNEL_OK")
</pallas_src>

<mosaic_0001>
module attributes {stable_mosaic.version = 11 : i64} {
  func.func @_maxpool_kernel(%arg0: i32, %arg1: memref<16x16x128xf32, #tpu.memory_space<vmem>>, %arg2: memref<16x16x128xf32, #tpu.memory_space<vmem>>, %arg3: memref<18x18x128xf32, #tpu.memory_space<vmem>>) attributes {dimension_semantics = [#tpu.dimension_semantics<parallel>], iteration_bounds = array<i64: 1>, scalar_prefetch = 0 : i64, scratch_operands = 1 : i64, tpu.core_type = #tpu.core_type<tc>, window_params = [{transform_indices = @transform_0, window_bounds = array<i64: 16, 16, 128>}, {transform_indices = @transform_1, window_bounds = array<i64: 16, 16, 128>}]} {
    %cst = arith.constant 0xFF800000 : f32
    %0 = vector.broadcast %cst : f32 to vector<18x18x128xf32>
    %c0 = arith.constant 0 : index
    %c0_0 = arith.constant 0 : index
    %c0_1 = arith.constant 0 : index
    %1 = vector.load %arg3[%c0, %c0_0, %c0_1] : memref<18x18x128xf32, #tpu.memory_space<vmem>>, vector<18x18x128xf32>
    tpu.vector_store %arg3[%c0, %c0_0, %c0_1], %0 {strides = array<i32>} : memref<18x18x128xf32, #tpu.memory_space<vmem>>, vector<18x18x128xf32>,
    %c0_2 = arith.constant 0 : index
    %c0_3 = arith.constant 0 : index
    %c0_4 = arith.constant 0 : index
    %2 = vector.load %arg1[%c0_2, %c0_3, %c0_4] : memref<16x16x128xf32, #tpu.memory_space<vmem>>, vector<16x16x128xf32>
    %c1 = arith.constant 1 : index
    %c1_5 = arith.constant 1 : index
    %c0_6 = arith.constant 0 : index
    %3 = vector.load %arg3[%c1, %c1_5, %c0_6] : memref<18x18x128xf32, #tpu.memory_space<vmem>>, vector<16x16x128xf32>
    tpu.vector_store %arg3[%c1, %c1_5, %c0_6], %2 {strides = array<i32>} : memref<18x18x128xf32, #tpu.memory_space<vmem>>, vector<16x16x128xf32>,
    %c0_7 = arith.constant 0 : index
    %c0_8 = arith.constant 0 : index
    %c0_9 = arith.constant 0 : index
    %4 = vector.load %arg3[%c0_7, %c0_8, %c0_9] : memref<18x18x128xf32, #tpu.memory_space<vmem>>, vector<16x18x128xf32>
    %c1_10 = arith.constant 1 : index
    %c0_11 = arith.constant 0 : index
    %c0_12 = arith.constant 0 : index
    %5 = vector.load %arg3[%c1_10, %c0_11, %c0_12] : memref<18x18x128xf32, #tpu.memory_space<vmem>>, vector<16x18x128xf32>
    %6 = arith.maximumf %4, %5 : vector<16x18x128xf32>
    %c2 = arith.constant 2 : index
    %c0_13 = arith.constant 0 : index
    %c0_14 = arith.constant 0 : index
    %7 = vector.load %arg3[%c2, %c0_13, %c0_14] : memref<18x18x128xf32, #tpu.memory_space<vmem>>, vector<16x18x128xf32>
    %8 = arith.maximumf %6, %7 : vector<16x18x128xf32>
    %9 = vector.extract_strided_slice %8 {offsets = [0, 0, 0], sizes = [16, 16, 128], strides = [1, 1, 1]} : vector<16x18x128xf32> to vector<16x16x128xf32>
    %10 = vector.extract_strided_slice %8 {offsets = [0, 1, 0], sizes = [16, 16, 128], strides = [1, 1, 1]} : vector<16x18x128xf32> to vector<16x16x128xf32>
    %11 = arith.maximumf %9, %10 : vector<16x16x128xf32>
    %12 = vector.extract_strided_slice %8 {offsets = [0, 2, 0], sizes = [16, 16, 128], strides = [1, 1, 1]} : vector<16x18x128xf32> to vector<16x16x128xf32>
    %13 = arith.maximumf %11, %12 : vector<16x16x128xf32>
    %c0_15 = arith.constant 0 : index
    %c0_16 = arith.constant 0 : index
    %c0_17 = arith.constant 0 : index
    %14 = vector.load %arg2[%c0_15, %c0_16, %c0_17] : memref<16x16x128xf32, #tpu.memory_space<vmem>>, vector<16x16x128xf32>
    tpu.vector_store %arg2[%c0_15, %c0_16, %c0_17], %13 {strides = array<i32>} : memref<16x16x128xf32, #tpu.memory_space<vmem>>, vector<16x16x128xf32>,
    return
  }
  func.func @transform_0(%arg0: i32) -> (i32, i32, i32) {
    %c0_i32 = arith.constant 0 : i32
    %c0_i32_0 = arith.constant 0 : i32
    %c0_i32_1 = arith.constant 0 : i32
    return %c0_i32, %c0_i32_0, %arg0 : i32, i32, i32
  }
  func.func @transform_1(%arg0: i32) -> (i32, i32, i32) {
    %c0_i32 = arith.constant 0 : i32
    %c0_i32_0 = arith.constant 0 : i32
    %c0_i32_1 = arith.constant 0 : i32
    return %c0_i32, %c0_i32_0, %arg0 : i32, i32, i32
  }
}

</mosaic_0001>

<llo_original>
// kernel: tpu_custom_call.1
$region0: #{tpu_custom_call.1}
  #allocation0 [shape = 'u32[]', space=smem, size = 0x4, offset = 0x4, fixed_abs, tag = 'smem constant byte address 0x4 - core index']
  #allocation1 [shape = 'u32[72,128]{1,0:T(1,128)}', space=vmem, size = 0x9000, scoped, tag = 'internal scratch']
  #allocation2 [shape = 'f32[18,18,128]{2,1,0:T(8,128)}', space=vmem, size = 0x36000, scoped, tag = 'scratch operand']
  %s0 = inlined_call_operand.hbm [shape: f32[16,16,128], index: 0, kind: input, shape index: {}]
  %s1 = inlined_call_operand.hbm [shape: f32[16,16,128], index: 1, kind: output, shape index: {}]
  %s2 = sld [smem:[#allocation0]]
  $region18: #{tpu_custom_call.1} parent=0
    _
  %s4 = ssub.s32 1, %s2
  %s5 = scalar_select 0, %s4, %s2
  $region1: #{tpu_custom_call.1} parent=0
    #allocation3 [shape = 'u8[131072]{0}', space=vmem, size = 0x20000, scoped, tag = 'input window, operand 0, single buffered']
    #allocation4 [shape = 's32[1]{0}', space=sflag, size = 0x4, scoped, tag = 'scoped memory for tpu_custom_call.1']
    #allocation5 [shape = 's32[1]{0}', space=sflag, size = 0x4, scoped, tag = 'scoped memory for tpu_custom_call.1']
    #allocation6 [shape = 'u8[131072]{0}', space=vmem, size = 0x20000, scoped, tag = 'output window, operand 0, single buffered']
    %6 = vsyncpa [#allocation4], 0
    %7 = vsyncpa [#allocation5], 0
    // Predicated region
    $region2: #{tpu_custom_call.1} parent=1 // pred_check
      _
    $region3: #{tpu_custom_call.1} parent=1 // pred_check_branch
      %9 = sbr.rel (0) target = $region5
    $region4: #{tpu_custom_call.1} parent=1 // pred_region
      %11 = vsyncadd [#allocation4], 0
      %s12 = sshll.u32 %s0, 4
      %s13 = int_to_ptr.hbm [resolvable:$true] %s12
      %s14 = sshll.u32 [#allocation3], 4
      %s15 = int_to_ptr.vmem [resolvable:$true] %s14
      %20 = dma.hbm_to_vmem [thread:$0]  %s13, 4096, %s15, [#allocation4], 128, 128, 8
    $region5: #{tpu_custom_call.1} parent=1 // pred_fallthru
      _
    // Predicated region
    $region6: #{tpu_custom_call.1} parent=1 // pred_check
      _
    $region7: #{tpu_custom_call.1} parent=1 // pred_check_branch
      %22 = sbr.rel (0) target = $region9
    $region8: #{tpu_custom_call.1} parent=1 // pred_region
      %24 = dma.done [#allocation4], 4096
    $region9: #{tpu_custom_call.1} parent=1 // pred_fallthru
      _
    %25 = vst [vmem:[#allocation2] sm:$0xff] -inf
    %26 = vst [vmem:[#allocation2 + $0x8] sm:$0xff] -inf
    %27 = vst [vmem:[#allocation2 + $0x10] sm:$0x3] -inf
    %28 = vst [vmem:[#allocation2 + $0x18] sm:$0xff] -inf
    %29 = vst [vmem:[#allocation2 + $0x20] sm:$0xff] -inf
    %30 = vst [vmem:[#allocation2 + $0x28] sm:$0x3] -inf
    %31 = vst [vmem:[#allocation2 + $0x30] sm:$0xff] -inf
    %32 = vst [vmem:[#allocation2 + $0x38] sm:$0xff] -inf
    %33 = vst [vmem:[#allocation2 + $0x40] sm:$0x3] -inf
    %34 = vst [vmem:[#allocation2 + $0x48] sm:$0xff] -inf
    %35 = vst [vmem:[#allocation2 + $0x50] sm:$0xff] -inf
    %36 = vst [vmem:[#allocation2 + $0x58] sm:$0x3] -inf
    %37 = vst [vmem:[#allocation2 + $0x60] sm:$0xff] -inf
    %38 = vst [vmem:[#allocation2 + $0x68] sm:$0xff] -inf
    %39 = vst [vmem:[#allocation2 + $0x70] sm:$0x3] -inf
    %40 = vst [vmem:[#allocation2 + $0x78] sm:$0xff] -inf
    %41 = vst [vmem:[#allocation2 + $0x80] sm:$0xff] -inf
    %42 = vst [vmem:[#allocation2 + $0x88] sm:$0x3] -inf
    %43 = vst [vmem:[#allocation2 + $0x90] sm:$0xff] -inf
    %44 = vst [vmem:[#allocation2 + $0x98] sm:$0xff] -inf
    %45 = vst [vmem:[#allocation2 + $0xa0] sm:$0x3] -inf
    %46 = vst [vmem:[#allocation2 + $0xa8] sm:$0xff] -inf
    %47 = vst [vmem:[#allocation2 + $0xb0] sm:$0xff] -inf
    %48 = vst [vmem:[#allocation2 + $0xb8] sm:$0x3] -inf
    %49 = vst [vmem:[#allocation2 + $0xc0] sm:$0xff] -inf
    %50 = vst [vmem:[#allocation2 + $0xc8] sm:$0xff] -inf
    %51 = vst [vmem:[#allocation2 + $0xd0] sm:$0x3] -inf
    %52 = vst [vmem:[#allocation2 + $0xd8] sm:$0xff] -inf
    %53 = vst [vmem:[#allocation2 + $0xe0] sm:$0xff] -inf
    %54 = vst [vmem:[#allocation2 + $0xe8] sm:$0x3] -inf
    %55 = vst [vmem:[#allocation2 + $0xf0] sm:$0xff] -inf
    %56 = vst [vmem:[#allocation2 + $0xf8] sm:$0xff] -inf
    %57 = vst [vmem:[#allocation2 + $0x100] sm:$0x3] -inf
    %58 = vst [vmem:[#allocation2 + $0x108] sm:$0xff] -inf
    %59 = vst [vmem:[#allocation2 + $0x110] sm:$0xff] -inf
    %60 = vst [vmem:[#allocation2 + $0x118] sm:$0x3] -inf
    %61 = vst [vmem:[#allocation2 + $0x120] sm:$0xff] -inf
    %62 = vst [vmem:[#allocation2 + $0x128] sm:$0xff] -inf
    %63 = vst [vmem:[#allocation2 + $0x130] sm:$0x3] -inf
    %64 = vst [vmem:[#allocation2 + $0x138] sm:$0xff] -inf
    %65 = vst [vmem:[#allocation2 + $0x140] sm:$0xff] -inf
    %66 = vst [vmem:[#allocation2 + $0x148] sm:$0x3] -inf
    %67 = vst [vmem:[#allocation2 + $0x150] sm:$0xff] -inf
    %68 = vst [vmem:[#allocation2 + $0x158] sm:$0xff] -inf
    %69 = vst [vmem:[#allocation2 + $0x160] sm:$0x3] -inf
    %70 = vst [vmem:[#allocation2 + $0x168] sm:$0xff] -inf
    %71 = vst [vmem:[#allocation2 + $0x170] sm:$0xff] -inf
    %72 = vst [vmem:[#allocation2 + $0x178] sm:$0x3] -inf
    %73 = vst [vmem:[#allocation2 + $0x180] sm:$0xff] -inf
    %74 = vst [vmem:[#allocation2 + $0x188] sm:$0xff] -inf
    %75 = vst [vmem:[#allocation2 + $0x190] sm:$0x3] -inf
    %76 = vst [vmem:[#allocation2 + $0x198] sm:$0xff] -inf
    %77 = vst [vmem:[#allocation2 + $0x1a0] sm:$0xff] -inf
    %78 = vst [vmem:[#allocation2 + $0x1a8] sm:$0x3] -inf
    %v79 = vld [vmem:[#allocation3] sm:$0xff]
    %v80 = vld [vmem:[#allocation3 + $0x8] sm:$0xff]
    %v81 = vld [vmem:[#allocation3 + $0x10] sm:$0xff]
    %v82 = vld [vmem:[#allocation3 + $0x18] sm:$0xff]
    %v83 = vld [vmem:[#allocation3 + $0x20] sm:$0xff]
    %v84 = vld [vmem:[#allocation3 + $0x28] sm:$0xff]
    %v85 = vld [vmem:[#allocation3 + $0x30] sm:$0xff]
    %v86 = vld [vmem:[#allocation3 + $0x38] sm:$0xff]
    %v87 = vld [vmem:[#allocation3 + $0x40] sm:$0xff]
    %v88 = vld [vmem:[#allocation3 + $0x48] sm:$0xff]
    %v89 = vld [vmem:[#allocation3 + $0x50] sm:$0xff]
    %v90 = vld [vmem:[#allocation3 + $0x58] sm:$0xff]
    %v91 = vld [vmem:[#allocation3 + $0x60] sm:$0xff]
    %v92 = vld [vmem:[#allocation3 + $0x68] sm:$0xff]
    %v93 = vld [vmem:[#allocation3 + $0x70] sm:$0xff]
    %v94 = vld [vmem:[#allocation3 + $0x78] sm:$0xff]
    %v95 = vld [vmem:[#allocation3 + $0x80] sm:$0xff]
    %v96 = vld [vmem:[#allocation3 + $0x88] sm:$0xff]
    %v97 = vld [vmem:[#allocation3 + $0x90] sm:$0xff]
    %v98 = vld [vmem:[#allocation3 + $0x98] sm:$0xff]
    %v99 = vld [vmem:[#allocation3 + $0xa0] sm:$0xff]
    %v100 = vld [vmem:[#allocation3 + $0xa8] sm:$0xff]
    %v101 = vld [vmem:[#allocation3 + $0xb0] sm:$0xff]
    %v102 = vld [vmem:[#allocation3 + $0xb8] sm:$0xff]
    %v103 = vld [vmem:[#allocation3 + $0xc0] sm:$0xff]
    %v104 = vld [vmem:[#allocation3 + $0xc8] sm:$0xff]
    %v105 = vld [vmem:[#allocation3 + $0xd0] sm:$0xff]
    %v106 = vld [vmem:[#allocation3 + $0xd8] sm:$0xff]
    %v107 = vld [vmem:[#allocation3 + $0xe0] sm:$0xff]
    %v108 = vld [vmem:[#allocation3 + $0xe8] sm:$0xff]
    %v109 = vld [vmem:[#allocation3 + $0xf0] sm:$0xff]
    %v110 = vld [vmem:[#allocation3 + $0xf8] sm:$0xff]
    %s111 = scalar_lea.vmem [#allocation2], 24
    %112 = vst [vmem:[%s111 + $0x1] sm:$0xff] %v79
    %113 = vst [vmem:[%s111 + $0x9] sm:$0xff] %v80
    %114 = vst [vmem:[%s111 + $0x19] sm:$0xff] %v81
    %115 = vst [vmem:[%s111 + $0x21] sm:$0xff] %v82
    %116 = vst [vmem:[%s111 + $0x31] sm:$0xff] %v83
    %117 = vst [vmem:[%s111 + $0x39] sm:$0xff] %v84
    %118 = vst [vmem:[%s111 + $0x49] sm:$0xff] %v85
    %119 = vst [vmem:[%s111 + $0x51] sm:$0xff] %v86
    %120 = vst [vmem:[%s111 + $0x61] sm:$0xff] %v87
    %121 = vst [vmem:[%s111 + $0x69] sm:$0xff] %v88
    %122 = vst [vmem:[%s111 + $0x79] sm:$0xff] %v89
    %123 = vst [vmem:[%s111 + $0x81] sm:$0xff] %v90
    %124 = vst [vmem:[%s111 + $0x91] sm:$0xff] %v91
    %125 = vst [vmem:[%s111 + $0x99] sm:$0xff] %v92
    %126 = vst [vmem:[%s111 + $0xa9] sm:$0xff] %v93
    %127 = vst [vmem:[%s111 + $0xb1] sm:$0xff] %v94
    %128 = vst [vmem:[%s111 + $0xc1] sm:$0xff] %v95
    %129 = vst [vmem:[%s111 + $0xc9] sm:$0xff] %v96
    %130 = vst [vmem:[%s111 + $0xd9] sm:$0xff] %v97
    %131 = vst [vmem:[%s111 + $0xe1] sm:$0xff] %v98
    %132 = vst [vmem:[%s111 + $0xf1] sm:$0xff] %v99
    %133 = vst [vmem:[%s111 + $0xf9] sm:$0xff] %v100
    %134 = vst [vmem:[%s111 + $0x109] sm:$0xff] %v101
    %135 = vst [vmem:[%s111 + $0x111] sm:$0xff] %v102
    %136 = vst [vmem:[%s111 + $0x121] sm:$0xff] %v103
    %137 = vst [vmem:[%s111 + $0x129] sm:$0xff] %v104
    %138 = vst [vmem:[%s111 + $0x139] sm:$0xff] %v105
    %139 = vst [vmem:[%s111 + $0x141] sm:$0xff] %v106
    %140 = vst [vmem:[%s111 + $0x151] sm:$0xff] %v107
    %141 = vst [vmem:[%s111 + $0x159] sm:$0xff] %v108
    %142 = vst [vmem:[%s111 + $0x169] sm:$0xff] %v109
    %143 = vst [vmem:[%s111 + $0x171] sm:$0xff] %v110
    %v144 = vld [vmem:[#allocation2] sm:$0xff]
    %v145 = vld [vmem:[#allocation2 + $0x8] sm:$0xff]
    %v146 = vld [vmem:[#allocation2 + $0x10] sm:$0x3]
    %v147 = vld [vmem:[#allocation2 + $0x18] sm:$0xff]
    %v148 = vld [vmem:[#allocation2 + $0x20] sm:$0xff]
    %v149 = vld [vmem:[#allocation2 + $0x28] sm:$0x3]
    %v150 = vld [vmem:[#allocation2 + $0x30] sm:$0xff]
    %v151 = vld [vmem:[#allocation2 + $0x38] sm:$0xff]
    %v152 = vld [vmem:[#allocation2 + $0x40] sm:$0x3]
    %v153 = vld [vmem:[#allocation2 + $0x48] sm:$0xff]
    %v154 = vld [vmem:[#allocation2 + $0x50] sm:$0xff]
    %v155 = vld [vmem:[#allocation2 + $0x58] sm:$0x3]
    %v156 = vld [vmem:[#allocation2 + $0x60] sm:$0xff]
    %v157 = vld [vmem:[#allocation2 + $0x68] sm:$0xff]
    %v158 = vld [vmem:[#allocation2 + $0x70] sm:$0x3]
    %v159 = vld [vmem:[#allocation2 + $0x78] sm:$0xff]
    %v160 = vld [vmem:[#allocation2 + $0x80] sm:$0xff]
    %v161 = vld [vmem:[#allocation2 + $0x88] sm:$0x3]
    %v162 = vld [vmem:[#allocation2 + $0x90] sm:$0xff]
    %v163 = vld [vmem:[#allocation2 + $0x98] sm:$0xff]
    %v164 = vld [vmem:[#allocation2 + $0xa0] sm:$0x3]
    %v165 = vld [vmem:[#allocation2 + $0xa8] sm:$0xff]
    %v166 = vld [vmem:[#allocation2 + $0xb0] sm:$0xff]
    %v167 = vld [vmem:[#allocation2 + $0xb8] sm:$0x3]
    %v168 = vld [vmem:[#allocation2 + $0xc0] sm:$0xff]
    %v169 = vld [vmem:[#allocation2 + $0xc8] sm:$0xff]
    %v170 = vld [vmem:[#allocation2 + $0xd0] sm:$0x3]
    %v171 = vld [vmem:[#allocation2 + $0xd8] sm:$0xff]
    %v172 = vld [vmem:[#allocation2 + $0xe0] sm:$0xff]
    %v173 = vld [vmem:[#allocation2 + $0xe8] sm:$0x3]
    %v174 = vld [vmem:[#allocation2 + $0xf0] sm:$0xff]
    %v175 = vld [vmem:[#allocation2 + $0xf8] sm:$0xff]
    %v176 = vld [vmem:[#allocation2 + $0x100] sm:$0x3]
    %v177 = vld [vmem:[#allocation2 + $0x108] sm:$0xff]
    %v178 = vld [vmem:[#allocation2 + $0x110] sm:$0xff]
    %v179 = vld [vmem:[#allocation2 + $0x118] sm:$0x3]
    %v180 = vld [vmem:[#allocation2 + $0x120] sm:$0xff]
    %v181 = vld [vmem:[#allocation2 + $0x128] sm:$0xff]
    %v182 = vld [vmem:[#allocation2 + $0x130] sm:$0x3]
    %v183 = vld [vmem:[#allocation2 + $0x138] sm:$0xff]
    %v184 = vld [vmem:[#allocation2 + $0x140] sm:$0xff]
    %v185 = vld [vmem:[#allocation2 + $0x148] sm:$0x3]
    %v186 = vld [vmem:[#allocation2 + $0x150] sm:$0xff]
    %v187 = vld [vmem:[#allocation2 + $0x158] sm:$0xff]
    %v188 = vld [vmem:[#allocation2 + $0x160] sm:$0x3]
    %v189 = vld [vmem:[#allocation2 + $0x168] sm:$0xff]
    %v190 = vld [vmem:[#allocation2 + $0x170] sm:$0xff]
    %v191 = vld [vmem:[#allocation2 + $0x178] sm:$0x3]
    %v192 = vld [vmem:[%s111] sm:$0xff]
    %v193 = vld [vmem:[%s111 + $0x8] sm:$0xff]
    %v194 = vld [vmem:[%s111 + $0x10] sm:$0x3]
    %v195 = vld [vmem:[%s111 + $0x18] sm:$0xff]
    %v196 = vld [vmem:[%s111 + $0x20] sm:$0xff]
    %v197 = vld [vmem:[%s111 + $0x28] sm:$0x3]
    %v198 = vld [vmem:[%s111 + $0x30] sm:$0xff]
    %v199 = vld [vmem:[%s111 + $0x38] sm:$0xff]
    %v200 = vld [vmem:[%s111 + $0x40] sm:$0x3]
    %v201 = vld [vmem:[%s111 + $0x48] sm:$0xff]
    %v202 = vld [vmem:[%s111 + $0x50] sm:$0xff]
    %v203 = vld [vmem:[%s111 + $0x58] sm:$0x3]
    %v204 = vld [vmem:[%s111 + $0x60] sm:$0xff]
    %v205 = vld [vmem:[%s111 + $0x68] sm:$0xff]
    %v206 = vld [vmem:[%s111 + $0x70] sm:$0x3]
    %v207 = vld [vmem:[%s111 + $0x78] sm:$0xff]
    %v208 = vld [vmem:[%s111 + $0x80] sm:$0xff]
    %v209 = vld [vmem:[%s111 + $0x88] sm:$0x3]
    %v210 = vld [vmem:[%s111 + $0x90] sm:$0xff]
    %v211 = vld [vmem:[%s111 + $0x98] sm:$0xff]
    %v212 = vld [vmem:[%s111 + $0xa0] sm:$0x3]
    %v213 = vld [vmem:[%s111 + $0xa8] sm:$0xff]
    %v214 = vld [vmem:[%s111 + $0xb0] sm:$0xff]
    %v215 = vld [vmem:[%s111 + $0xb8] sm:$0x3]
    %v216 = vld [vmem:[%s111 + $0xc0] sm:$0xff]
    %v217 = vld [vmem:[%s111 + $0xc8] sm:$0xff]
    %v218 = vld [vmem:[%s111 + $0xd0] sm:$0x3]
    %v219 = vld [vmem:[%s111 + $0xd8] sm:$0xff]
    %v220 = vld [vmem:[%s111 + $0xe0] sm:$0xff]
    %v221 = vld [vmem:[%s111 + $0xe8] sm:$0x3]
    %v222 = vld [vmem:[%s111 + $0xf0] sm:$0xff]
    %v223 = vld [vmem:[%s111 + $0xf8] sm:$0xff]
    %v224 = vld [vmem:[%s111 + $0x100] sm:$0x3]
    %v225 = vld [vmem:[%s111 + $0x108] sm:$0xff]
    %v226 = vld [vmem:[%s111 + $0x110] sm:$0xff]
    %v227 = vld [vmem:[%s111 + $0x118] sm:$0x3]
    %v228 = vld [vmem:[%s111 + $0x120] sm:$0xff]
    %v229 = vld [vmem:[%s111 + $0x128] sm:$0xff]
    %v230 = vld [vmem:[%s111 + $0x130] sm:$0x3]
    %v231 = vld [vmem:[%s111 + $0x138] sm:$0xff]
    %v232 = vld [vmem:[%s111 + $0x140] sm:$0xff]
    %v233 = vld [vmem:[%s111 + $0x148] sm:$0x3]
    %v234 = vld [vmem:[%s111 + $0x150] sm:$0xff]
    %v235 = vld [vmem:[%s111 + $0x158] sm:$0xff]
    %v236 = vld [vmem:[%s111 + $0x160] sm:$0x3]
    %v237 = vld [vmem:[%s111 + $0x168] sm:$0xff]
    %v238 = vld [vmem:[%s111 + $0x170] sm:$0xff]
    %v239 = vld [vmem:[%s111 + $0x178] sm:$0x3]
    %v240 = vmax.f32 %v144, %v192
    %v241 = vmax.f32 %v145, %v193
    %v242 = vmax.f32 %v146, %v194
    %v243 = vmax.f32 %v147, %v195
    %v244 = vmax.f32 %v148, %v196
    %v245 = vmax.f32 %v149, %v197
    %v246 = vmax.f32 %v150, %v198
    %v247 = vmax.f32 %v151, %v199
    %v248 = vmax.f32 %v152, %v200
    %v249 = vmax.f32 %v153, %v201
    %v250 = vmax.f32 %v154, %v202
    %v251 = vmax.f32 %v155, %v203
    %v252 = vmax.f32 %v156, %v204
    %v253 = vmax.f32 %v157, %v205
    %v254 = vmax.f32 %v158, %v206
    %v255 = vmax.f32 %v159, %v207
    %v256 = vmax.f32 %v160, %v208
    %v257 = vmax.f32 %v161, %v209
    %v258 = vmax.f32 %v162, %v210
    %v259 = vmax.f32 %v163, %v211
    %v260 = vmax.f32 %v164, %v212
    %v261 = vmax.f32 %v165, %v213
    %v262 = vmax.f32 %v166, %v214
    %v263 = vmax.f32 %v167, %v215
    %v264 = vmax.f32 %v168, %v216
    %v265 = vmax.f32 %v169, %v217
    %v266 = vmax.f32 %v170, %v218
    %v267 = vmax.f32 %v171, %v219
    %v268 = vmax.f32 %v172, %v220
    %v269 = vmax.f32 %v173, %v221
    %v270 = vmax.f32 %v174, %v222
    %v271 = vmax.f32 %v175, %v223
    %v272 = vmax.f32 %v176, %v224
    %v273 = vmax.f32 %v177, %v225
    %v274 = vmax.f32 %v178, %v226
    %v275 = vmax.f32 %v179, %v227
    %v276 = vmax.f32 %v180, %v228
    %v277 = vmax.f32 %v181, %v229
    %v278 = vmax.f32 %v182, %v230
    %v279 = vmax.f32 %v183, %v231
    %v280 = vmax.f32 %v184, %v232
    %v281 = vmax.f32 %v185, %v233
    %v282 = vmax.f32 %v186, %v234
    %v283 = vmax.f32 %v187, %v235
    %v284 = vmax.f32 %v188, %v236
    %v285 = vmax.f32 %v189, %v237
    %v286 = vmax.f32 %v190, %v238
    %v287 = vmax.f32 %v191, %v239
    %s288 = scalar_lea.vmem [#allocation2], 48
    %v289 = vld [vmem:[%s288] sm:$0xff]
    %v290 = vld [vmem:[%s288 + $0x8] sm:$0xff]
    %v291 = vld [vmem:[%s288 + $0x10] sm:$0x3]
    %v292 = vld [vmem:[%s288 + $0x18] sm:$0xff]
    %v293 = vld [vmem:[%s288 + $0x20] sm:$0xff]
    %v294 = vld [vmem:[%s288 + $0x28] sm:$0x3]
    %v295 = vld [vmem:[%s288 + $0x30] sm:$0xff]
    %v296 = vld [vmem:[%s288 + $0x38] sm:$0xff]
    %v297 = vld [vmem:[%s288 + $0x40] sm:$0x3]
    %v298 = vld [vmem:[%s288 + $0x48] sm:$0xff]
    %v299 = vld [vmem:[%s288 + $0x50] sm:$0xff]
    %v300 = vld [vmem:[%s288 + $0x58] sm:$0x3]
    %v301 = vld [vmem:[%s288 + $0x60] sm:$0xff]
    %v302 = vld [vmem:[%s288 + $0x68] sm:$0xff]
    %v303 = vld [vmem:[%s288 + $0x70] sm:$0x3]
    %v304 = vld [vmem:[%s288 + $0x78] sm:$0xff]
    %v305 = vld [vmem:[%s288 + $0x80] sm:$0xff]
    %v306 = vld [vmem:[%s288 + $0x88] sm:$0x3]
    %v307 = vld [vmem:[%s288 + $0x90] sm:$0xff]
    %v308 = vld [vmem:[%s288 + $0x98] sm:$0xff]
    %v309 = vld [vmem:[%s288 + $0xa0] sm:$0x3]
    %v310 = vld [vmem:[%s288 + $0xa8] sm:$0xff]
    %v311 = vld [vmem:[%s288 + $0xb0] sm:$0xff]
    %v312 = vld [vmem:[%s288 + $0xb8] sm:$0x3]
    %v313 = vld [vmem:[%s288 + $0xc0] sm:$0xff]
    %v314 = vld [vmem:[%s288 + $0xc8] sm:$0xff]
    %v315 = vld [vmem:[%s288 + $0xd0] sm:$0x3]
    %v316 = vld [vmem:[%s288 + $0xd8] sm:$0xff]
    %v317 = vld [vmem:[%s288 + $0xe0] sm:$0xff]
    %v318 = vld [vmem:[%s288 + $0xe8] sm:$0x3]
    %v319 = vld [vmem:[%s288 + $0xf0] sm:$0xff]
    %v320 = vld [vmem:[%s288 + $0xf8] sm:$0xff]
    %v321 = vld [vmem:[%s288 + $0x100] sm:$0x3]
    %v322 = vld [vmem:[%s288 + $0x108] sm:$0xff]
    %v323 = vld [vmem:[%s288 + $0x110] sm:$0xff]
    %v324 = vld [vmem:[%s288 + $0x118] sm:$0x3]
    %v325 = vld [vmem:[%s288 + $0x120] sm:$0xff]
    %v326 = vld [vmem:[%s288 + $0x128] sm:$0xff]
    %v327 = vld [vmem:[%s288 + $0x130] sm:$0x3]
    %v328 = vld [vmem:[%s288 + $0x138] sm:$0xff]
    %v329 = vld [vmem:[%s288 + $0x140] sm:$0xff]
    %v330 = vld [vmem:[%s288 + $0x148] sm:$0x3]
    %v331 = vld [vmem:[%s288 + $0x150] sm:$0xff]
    %v332 = vld [vmem:[%s288 + $0x158] sm:$0xff]
    %v333 = vld [vmem:[%s288 + $0x160] sm:$0x3]
    %v334 = vld [vmem:[%s288 + $0x168] sm:$0xff]
    %v335 = vld [vmem:[%s288 + $0x170] sm:$0xff]
    %v336 = vld [vmem:[%s288 + $0x178] sm:$0x3]
    %v337 = vmax.f32 %v240, %v289
    %v338 = vmax.f32 %v241, %v290
    %v339 = vmax.f32 %v242, %v291
    %v340 = vmax.f32 %v243, %v292
    %v341 = vmax.f32 %v244, %v293
    %v342 = vmax.f32 %v245, %v294
    %v343 = vmax.f32 %v246, %v295
    %v344 = vmax.f32 %v247, %v296
    %v345 = vmax.f32 %v248, %v297
    %v346 = vmax.f32 %v249, %v298
    %v347 = vmax.f32 %v250, %v299
    %v348 = vmax.f32 %v251, %v300
    %v349 = vmax.f32 %v252, %v301
    %v350 = vmax.f32 %v253, %v302
    %v351 = vmax.f32 %v254, %v303
    %v352 = vmax.f32 %v255, %v304
    %v353 = vmax.f32 %v256, %v305
    %v354 = vmax.f32 %v257, %v306
    %v355 = vmax.f32 %v258, %v307
    %v356 = vmax.f32 %v259, %v308
    %v357 = vmax.f32 %v260, %v309
    %v358 = vmax.f32 %v261, %v310
    %v359 = vmax.f32 %v262, %v311
    %v360 = vmax.f32 %v263, %v312
    %v361 = vmax.f32 %v264, %v313
    %v362 = vmax.f32 %v265, %v314
    %v363 = vmax.f32 %v266, %v315
    %v364 = vmax.f32 %v267, %v316
    %v365 = vmax.f32 %v268, %v317
    %v366 = vmax.f32 %v269, %v318
    %v367 = vmax.f32 %v270, %v319
    %v368 = vmax.f32 %v271, %v320
    %v369 = vmax.f32 %v272, %v321
    %v370 = vmax.f32 %v273, %v322
    %v371 = vmax.f32 %v274, %v323
    %v372 = vmax.f32 %v275, %v324
    %v373 = vmax.f32 %v276, %v325
    %v374 = vmax.f32 %v277, %v326
    %v375 = vmax.f32 %v278, %v327
    %v376 = vmax.f32 %v279, %v328
    %v377 = vmax.f32 %v280, %v329
    %v378 = vmax.f32 %v281, %v330
    %v379 = vmax.f32 %v282, %v331
    %v380 = vmax.f32 %v283, %v332
    %v381 = vmax.f32 %v284, %v333
    %v382 = vmax.f32 %v285, %v334
    %v383 = vmax.f32 %v286, %v335
    %v384 = vmax.f32 %v287, %v336
    %vm433 = vcmask 1046528
    %v434 = vrot.slane %v337, 1
    %v435 = vrot.slane %v338, 1
    %v436 = vsel %vm433, %v434, %v435
    %v437 = vrot.slane %v339, 1
    %v438 = vsel %vm433, %v435, %v437
    %v439 = vrot.slane %v340, 1
    %v440 = vrot.slane %v341, 1
    %v441 = vsel %vm433, %v439, %v440
    %v442 = vrot.slane %v342, 1
    %v443 = vsel %vm433, %v440, %v442
    %v444 = vrot.slane %v343, 1
    %v445 = vrot.slane %v344, 1
    %v446 = vsel %vm433, %v444, %v445
    %v447 = vrot.slane %v345, 1
    %v448 = vsel %vm433, %v445, %v447
    %v449 = vrot.slane %v346, 1
    %v450 = vrot.slane %v347, 1
    %v451 = vsel %vm433, %v449, %v450
    %v452 = vrot.slane %v348, 1
    %v453 = vsel %vm433, %v450, %v452
    %v454 = vrot.slane %v349, 1
    %v455 = vrot.slane %v350, 1
    %v456 = vsel %vm433, %v454, %v455
    %v457 = vrot.slane %v351, 1
    %v458 = vsel %vm433, %v455, %v457
    %v459 = vrot.slane %v352, 1
    %v460 = vrot.slane %v353, 1
    %v461 = vsel %vm433, %v459, %v460
    %v462 = vrot.slane %v354, 1
    %v463 = vsel %vm433, %v460, %v462
    %v464 = vrot.slane %v355, 1
    %v465 = vrot.slane %v356, 1
    %v466 = vsel %vm433, %v464, %v465
    %v467 = vrot.slane %v357, 1
    %v468 = vsel %vm433, %v465, %v467
    %v469 = vrot.slane %v358, 1
    %v470 = vrot.slane %v359, 1
    %v471 = vsel %vm433, %v469, %v470
    %v472 = vrot.slane %v360, 1
    %v473 = vsel %vm433, %v470, %v472
    %v474 = vrot.slane %v361, 1
    %v475 = vrot.slane %v362, 1
    %v476 = vsel %vm433, %v474, %v475
    %v477 = vrot.slane %v363, 1
    %v478 = vsel %vm433, %v475, %v477
    %v479 = vrot.slane %v364, 1
    %v480 = vrot.slane %v365, 1
    %v481 = vsel %vm433, %v479, %v480
    %v482 = vrot.slane %v366, 1
    %v483 = vsel %vm433, %v480, %v482
    %v484 = vrot.slane %v367, 1
    %v485 = vrot.slane %v368, 1
    %v486 = vsel %vm433, %v484, %v485
    %v487 = vrot.slane %v369, 1
    %v488 = vsel %vm433, %v485, %v487
    %v489 = vrot.slane %v370, 1
    %v490 = vrot.slane %v371, 1
    %v491 = vsel %vm433, %v489, %v490
    %v492 = vrot.slane %v372, 1
    %v493 = vsel %vm433, %v490, %v492
    %v494 = vrot.slane %v373, 1
    %v495 = vrot.slane %v374, 1
    %v496 = vsel %vm433, %v494, %v495
    %v497 = vrot.slane %v375, 1
    %v498 = vsel %vm433, %v495, %v497
    %v499 = vrot.slane %v376, 1
    %v500 = vrot.slane %v377, 1
    %v501 = vsel %vm433, %v499, %v500
    %v502 = vrot.slane %v378, 1
    %v503 = vsel %vm433, %v500, %v502
    %v504 = vrot.slane %v379, 1
    %v505 = vrot.slane %v380, 1
    %v506 = vsel %vm433, %v504, %v505
    %v507 = vrot.slane %v381, 1
    %v508 = vsel %vm433, %v505, %v507
    %v509 = vrot.slane %v382, 1
    %v510 = vrot.slane %v383, 1
    %v511 = vsel %vm433, %v509, %v510
    %v512 = vrot.slane %v384, 1
    %v513 = vsel %vm433, %v510, %v512
    %v546 = vmax.f32 %v337, %v436
    %v547 = vmax.f32 %v338, %v438
    %v548 = vmax.f32 %v340, %v441
    %v549 = vmax.f32 %v341, %v443
    %v550 = vmax.f32 %v343, %v446
    %v551 = vmax.f32 %v344, %v448
    %v552 = vmax.f32 %v346, %v451
    %v553 = vmax.f32 %v347, %v453
    %v554 = vmax.f32 %v349, %v456
    %v555 = vmax.f32 %v350, %v458
    %v556 = vmax.f32 %v352, %v461
    %v557 = vmax.f32 %v353, %v463
    %v558 = vmax.f32 %v355, %v466
    %v559 = vmax.f32 %v356, %v468
    %v560 = vmax.f32 %v358, %v471
    %v561 = vmax.f32 %v359, %v473
    %v562 = vmax.f32 %v361, %v476
    %v563 = vmax.f32 %v362, %v478
    %v564 = vmax.f32 %v364, %v481
    %v565 = vmax.f32 %v365, %v483
    %v566 = vmax.f32 %v367, %v486
    %v567 = vmax.f32 %v368, %v488
    %v568 = vmax.f32 %v370, %v491
    %v569 = vmax.f32 %v371, %v493
    %v570 = vmax.f32 %v373, %v496
    %v571 = vmax.f32 %v374, %v498
    %v572 = vmax.f32 %v376, %v501
    %v573 = vmax.f32 %v377, %v503
    %v574 = vmax.f32 %v379, %v506
    %v575 = vmax.f32 %v380, %v508
    %v576 = vmax.f32 %v382, %v511
    %v577 = vmax.f32 %v383, %v513
    %vm578 = vcmask 1045504
    %v579 = vrot.slane %v337, 2
    %v580 = vrot.slane %v338, 2
    %v581 = vsel %vm578, %v579, %v580
    %v582 = vrot.slane %v339, 2
    %v583 = vsel %vm578, %v580, %v582
    %v584 = vrot.slane %v340, 2
    %v585 = vrot.slane %v341, 2
    %v586 = vsel %vm578, %v584, %v585
    %v587 = vrot.slane %v342, 2
    %v588 = vsel %vm578, %v585, %v587
    %v589 = vrot.slane %v343, 2
    %v590 = vrot.slane %v344, 2
    %v591 = vsel %vm578, %v589, %v590
    %v592 = vrot.slane %v345, 2
    %v593 = vsel %vm578, %v590, %v592
    %v594 = vrot.slane %v346, 2
    %v595 = vrot.slane %v347, 2
    %v596 = vsel %vm578, %v594, %v595
    %v597 = vrot.slane %v348, 2
    %v598 = vsel %vm578, %v595, %v597
    %v599 = vrot.slane %v349, 2
    %v600 = vrot.slane %v350, 2
    %v601 = vsel %vm578, %v599, %v600
    %v602 = vrot.slane %v351, 2
    %v603 = vsel %vm578, %v600, %v602
    %v604 = vrot.slane %v352, 2
    %v605 = vrot.slane %v353, 2
    %v606 = vsel %vm578, %v604, %v605
    %v607 = vrot.slane %v354, 2
    %v608 = vsel %vm578, %v605, %v607
    %v609 = vrot.slane %v355, 2
    %v610 = vrot.slane %v356, 2
    %v611 = vsel %vm578, %v609, %v610
    %v612 = vrot.slane %v357, 2
    %v613 = vsel %vm578, %v610, %v612
    %v614 = vrot.slane %v358, 2
    %v615 = vrot.slane %v359, 2
    %v616 = vsel %vm578, %v614, %v615
    %v617 = vrot.slane %v360, 2
    %v618 = vsel %vm578, %v615, %v617
    %v619 = vrot.slane %v361, 2
    %v620 = vrot.slane %v362, 2
    %v621 = vsel %vm578, %v619, %v620
    %v622 = vrot.slane %v363, 2
    %v623 = vsel %vm578, %v620, %v622
    %v624 = vrot.slane %v364, 2
    %v625 = vrot.slane %v365, 2
    %v626 = vsel %vm578, %v624, %v625
    %v627 = vrot.slane %v366, 2
    %v628 = vsel %vm578, %v625, %v627
    %v629 = vrot.slane %v367, 2
    %v630 = vrot.slane %v368, 2
    %v631 = vsel %vm578, %v629, %v630
    %v632 = vrot.slane %v369, 2
    %v633 = vsel %vm578, %v630, %v632
    %v634 = vrot.slane %v370, 2
    %v635 = vrot.slane %v371, 2
    %v636 = vsel %vm578, %v634, %v635
    %v637 = vrot.slane %v372, 2
    %v638 = vsel %vm578, %v635, %v637
    %v639 = vrot.slane %v373, 2
    %v640 = vrot.slane %v374, 2
    %v641 = vsel %vm578, %v639, %v640
    %v642 = vrot.slane %v375, 2
    %v643 = vsel %vm578, %v640, %v642
    %v644 = vrot.slane %v376, 2
    %v645 = vrot.slane %v377, 2
    %v646 = vsel %vm578, %v644, %v645
    %v647 = vrot.slane %v378, 2
    %v648 = vsel %vm578, %v645, %v647
    %v649 = vrot.slane %v379, 2
    %v650 = vrot.slane %v380, 2
    %v651 = vsel %vm578, %v649, %v650
    %v652 = vrot.slane %v381, 2
    %v653 = vsel %vm578, %v650, %v652
    %v654 = vrot.slane %v382, 2
    %v655 = vrot.slane %v383, 2
    %v656 = vsel %vm578, %v654, %v655
    %v657 = vrot.slane %v384, 2
    %v658 = vsel %vm578, %v655, %v657
    %v691 = vmax.f32 %v546, %v581
    %v692 = vmax.f32 %v547, %v583
    %v693 = vmax.f32 %v548, %v586
    %v694 = vmax.f32 %v549, %v588
    %v695 = vmax.f32 %v550, %v591
    %v696 = vmax.f32 %v551, %v593
    %v697 = vmax.f32 %v552, %v596
    %v698 = vmax.f32 %v553, %v598
    %v699 = vmax.f32 %v554, %v601
    %v700 = vmax.f32 %v555, %v603
    %v701 = vmax.f32 %v556, %v606
    %v702 = vmax.f32 %v557, %v608
    %v703 = vmax.f32 %v558, %v611
    %v704 = vmax.f32 %v559, %v613
    %v705 = vmax.f32 %v560, %v616
    %v706 = vmax.f32 %v561, %v618
    %v707 = vmax.f32 %v562, %v621
    %v708 = vmax.f32 %v563, %v623
    %v709 = vmax.f32 %v564, %v626
    %v710 = vmax.f32 %v565, %v628
    %v711 = vmax.f32 %v566, %v631
    %v712 = vmax.f32 %v567, %v633
    %v713 = vmax.f32 %v568, %v636
    %v714 = vmax.f32 %v569, %v638
    %v715 = vmax.f32 %v570, %v641
    %v716 = vmax.f32 %v571, %v643
    %v717 = vmax.f32 %v572, %v646
    %v718 = vmax.f32 %v573, %v648
    %v719 = vmax.f32 %v574, %v651
    %v720 = vmax.f32 %v575, %v653
    %v721 = vmax.f32 %v576, %v656
    %v722 = vmax.f32 %v577, %v658
    %723 = vst [vmem:[#allocation6] sm:$0xff] %v691
    %724 = vst [vmem:[#allocation6 + $0x8] sm:$0xff] %v692
    %725 = vst [vmem:[#allocation6 + $0x10] sm:$0xff] %v693
    %726 = vst [vmem:[#allocation6 + $0x18] sm:$0xff] %v694
    %727 = vst [vmem:[#allocation6 + $0x20] sm:$0xff] %v695
    %728 = vst [vmem:[#allocation6 + $0x28] sm:$0xff] %v696
    %729 = vst [vmem:[#allocation6 + $0x30] sm:$0xff] %v697
    %730 = vst [vmem:[#allocation6 + $0x38] sm:$0xff] %v698
    %731 = vst [vmem:[#allocation6 + $0x40] sm:$0xff] %v699
    %732 = vst [vmem:[#allocation6 + $0x48] sm:$0xff] %v700
    %733 = vst [vmem:[#allocation6 + $0x50] sm:$0xff] %v701
    %734 = vst [vmem:[#allocation6 + $0x58] sm:$0xff] %v702
    %735 = vst [vmem:[#allocation6 + $0x60] sm:$0xff] %v703
    %736 = vst [vmem:[#allocation6 + $0x68] sm:$0xff] %v704
    %737 = vst [vmem:[#allocation6 + $0x70] sm:$0xff] %v705
    %738 = vst [vmem:[#allocation6 + $0x78] sm:$0xff] %v706
    %739 = vst [vmem:[#allocation6 + $0x80] sm:$0xff] %v707
    %740 = vst [vmem:[#allocation6 + $0x88] sm:$0xff] %v708
    %741 = vst [vmem:[#allocation6 + $0x90] sm:$0xff] %v709
    %742 = vst [vmem:[#allocation6 + $0x98] sm:$0xff] %v710
    %743 = vst [vmem:[#allocation6 + $0xa0] sm:$0xff] %v711
    %744 = vst [vmem:[#allocation6 + $0xa8] sm:$0xff] %v712
    %745 = vst [vmem:[#allocation6 + $0xb0] sm:$0xff] %v713
    %746 = vst [vmem:[#allocation6 + $0xb8] sm:$0xff] %v714
    %747 = vst [vmem:[#allocation6 + $0xc0] sm:$0xff] %v715
    %748 = vst [vmem:[#allocation6 + $0xc8] sm:$0xff] %v716
    %749 = vst [vmem:[#allocation6 + $0xd0] sm:$0xff] %v717
    %750 = vst [vmem:[#allocation6 + $0xd8] sm:$0xff] %v718
    %751 = vst [vmem:[#allocation6 + $0xe0] sm:$0xff] %v719
    %752 = vst [vmem:[#allocation6 + $0xe8] sm:$0xff] %v720
    %753 = vst [vmem:[#allocation6 + $0xf0] sm:$0xff] %v721
    %754 = vst [vmem:[#allocation6 + $0xf8] sm:$0xff] %v722
    // Predicated region
    $region10: #{tpu_custom_call.1} parent=1 // pred_check
      _
    $region11: #{tpu_custom_call.1} parent=1 // pred_check_branch
      %756 = sbr.rel (0) target = $region13
    $region12: #{tpu_custom_call.1} parent=1 // pred_region
      %758 = vsyncadd [#allocation5], 0
      %s759 = sshll.u32 [#allocation6], 4
      %s760 = int_to_ptr.vmem [resolvable:$true] %s759
      %s761 = sshll.u32 %s1, 4
      %s762 = int_to_ptr.hbm [resolvable:$true] %s761
      %767 = dma.vmem_to_hbm [thread:$0]  %s760, 4096, %s762, [#allocation5], 128, 128, 8
    $region13: #{tpu_custom_call.1} parent=1 // pred_fallthru
      _
    // Predicated region
    $region14: #{tpu_custom_call.1} parent=1 // pred_check
      _
    $region15: #{tpu_custom_call.1} parent=1 // pred_check_branch
      %769 = sbr.rel (0) target = $region17
    $region16: #{tpu_custom_call.1} parent=1 // pred_region
      %771 = dma.done [#allocation5], 4096
    $region17: #{tpu_custom_call.1} parent=1 // pred_fallthru
      _
    %772 = vsyncpa [#allocation4], 1
    %773 = vsyncpa [#allocation5], 1

</llo_original>
